<compile_context>
chip_gen: v5e
topology: v5e:2x2
jax: 0.10.0
libtpu: 0.0.40
codegen_flags: <defaults>
</compile_context>

<pallas_src>
import jax
import jax.numpy as jnp
from jax.experimental import pallas as pl
from jax.experimental.pallas import tpu as pltpu  # noqa: F401  (TPU backend)


C_IN = 3
C_OUT = 8
K = 2
PAD = 1
L_IN = 224
L_OUT = (L_IN - 1) - 2 * PAD + (K - 1) + 1  # = 223


def convtranspose_relu_kernel(w1t_ref, w0t_ref, b_ref, x_ref, o_ref):
    # w1t_ref: (C_OUT, C_IN) = weight[:, :, 1].T   -> pairs with x[:, l]
    # w0t_ref: (C_OUT, C_IN) = weight[:, :, 0].T   -> pairs with x[:, l + 1]
    # b_ref  : (C_OUT, 1)    bias column
    # x_ref  : (C_IN, L_IN)  full activation block
    # o_ref  : (C_OUT, L_OUT)
    x = x_ref[...]                                                     # (3, 224)
    a = jnp.dot(w1t_ref[...], x, preferred_element_type=jnp.float32)  # (8, 224)
    b = jnp.dot(w0t_ref[...], x, preferred_element_type=jnp.float32)  # (8, 224)
    # ConvTranspose1d(stride=1, pad=1): y[:, l] = w1.T@x[:, l] + w0.T@x[:, l+1] + bias
    y = a[:, :L_OUT] + b[:, 1:L_OUT + 1] + b_ref[...]                 # (8, 223)
    o_ref[...] = jnp.maximum(y, 0.0).astype(o_ref.dtype)


def pack_params(weight, bias):
    """One-time (init-time) parameter packing; not on the per-call path."""
    w = weight.astype(jnp.float32)                 # (C_IN, C_OUT, K)
    w1t = w[:, :, 1].T                             # (C_OUT, C_IN)
    w0t = w[:, :, 0].T                             # (C_OUT, C_IN)
    b_col = bias.astype(jnp.float32)[:, None]      # (C_OUT, 1)
    return w1t, w0t, b_col


@jax.jit
def conv_transpose_relu(x_ncl, w1t, w0t, b_col):
    """x_ncl: (1, C_IN, L_IN). Returns (1, C_OUT, L_OUT)."""
    x = x_ncl[0].astype(jnp.float32)               # (C_IN, L_IN)

    full = lambda shape: pl.BlockSpec(shape, lambda: tuple(0 for _ in shape))
    y = pl.pallas_call(
        convtranspose_relu_kernel,
        out_shape=jax.ShapeDtypeStruct((C_OUT, L_OUT), jnp.float32),
        grid=(),
        in_specs=[
            full((C_OUT, C_IN)),
            full((C_OUT, C_IN)),
            full((C_OUT, 1)),
            full((C_IN, L_IN)),
        ],
        out_specs=full((C_OUT, L_OUT)),
        cost_estimate=pl.CostEstimate(
            flops=2 * 2 * C_OUT * C_IN * L_IN,
            transcendentals=0,
            bytes_accessed=4 * (2 * C_OUT * C_IN + C_OUT
                                + C_IN * L_IN + C_OUT * L_OUT),
        ),
    )(w1t, w0t, b_col, x)

    return y[None]                                 # (1, C_OUT, L_OUT)


def reference(x_ncl, weight, bias):
    """Direct scatter definition of ConvTranspose1d (stride=1) + ReLU."""
    x = x_ncl[0]                                   # (C_IN, L_IN)
    y_full = jnp.zeros((C_OUT, L_IN + K - 1), jnp.float32)
    for k in range(K):
        y_full = y_full.at[:, k:k + L_IN].add(weight[:, :, k].T @ x)
    y = y_full[:, PAD:PAD + L_OUT] + bias[:, None]
    return jnp.maximum(y, 0.0)[None]


if __name__ == "__main__":
    key = jax.random.PRNGKey(0)
    kx, kw, kb = jax.random.split(key, 3)

    x1 = jax.random.normal(kx, (1, C_IN, L_IN), dtype=jnp.float32)
    # Same shapes as torch.nn.ConvTranspose1d(3, 8, 2) parameters:
    weight = 0.1 * jax.random.normal(kw, (C_IN, C_OUT, K), dtype=jnp.float32)
    bias = 0.1 * jax.random.normal(kb, (C_OUT,), dtype=jnp.float32)

    # Parameter packing done once at init (hoisted off the per-call path).
    w1t, w0t, b_col = pack_params(weight, bias)

    out = conv_transpose_relu(x1, w1t, w0t, b_col)
    jax.block_until_ready(out)

    ref = reference(x1, weight, bias)
    assert out.shape == (1, C_OUT, L_OUT), out.shape
    assert jnp.max(jnp.abs(out - ref)) < 1e-4

    print("KERNEL_OK")
</pallas_src>

<mosaic_0001>
module attributes {stable_mosaic.version = 11 : i64} {
  func.func @convtranspose_relu_kernel(%arg0: memref<8x3xf32, #tpu.memory_space<vmem>>, %arg1: memref<8x3xf32, #tpu.memory_space<vmem>>, %arg2: memref<8x1xf32, #tpu.memory_space<vmem>>, %arg3: memref<3x224xf32, #tpu.memory_space<vmem>>, %arg4: memref<8x223xf32, #tpu.memory_space<vmem>>) attributes {dimension_semantics = [], scalar_prefetch = 0 : i64, scratch_operands = 0 : i64, tpu.core_type = #tpu.core_type<tc>} {
    %c0 = arith.constant 0 : index
    %c0_0 = arith.constant 0 : index
    %0 = vector.load %arg3[%c0, %c0_0] : memref<3x224xf32, #tpu.memory_space<vmem>>, vector<3x224xf32>
    %c0_1 = arith.constant 0 : index
    %c0_2 = arith.constant 0 : index
    %1 = vector.load %arg0[%c0_1, %c0_2] : memref<8x3xf32, #tpu.memory_space<vmem>>, vector<8x3xf32>
    %cst = arith.constant dense<0.000000e+00> : vector<8x224xf32>
    %2 = tpu.matmul %1, %0, %cst {dimension_numbers = #tpu.dot_dimension_numbers<[1], [0], [0], [1], [0, 0, 1, 1], [], []>} : vector<8x3xf32>, vector<3x224xf32>, vector<8x224xf32> -> vector<8x224xf32>
    %c0_3 = arith.constant 0 : index
    %c0_4 = arith.constant 0 : index
    %3 = vector.load %arg1[%c0_3, %c0_4] : memref<8x3xf32, #tpu.memory_space<vmem>>, vector<8x3xf32>
    %cst_5 = arith.constant dense<0.000000e+00> : vector<8x224xf32>
    %4 = tpu.matmul %3, %0, %cst_5 {dimension_numbers = #tpu.dot_dimension_numbers<[1], [0], [0], [1], [0, 0, 1, 1], [], []>} : vector<8x3xf32>, vector<3x224xf32>, vector<8x224xf32> -> vector<8x224xf32>
    %5 = vector.extract_strided_slice %2 {offsets = [0, 0], sizes = [8, 223], strides = [1, 1]} : vector<8x224xf32> to vector<8x223xf32>
    %6 = vector.extract_strided_slice %4 {offsets = [0, 1], sizes = [8, 223], strides = [1, 1]} : vector<8x224xf32> to vector<8x223xf32>
    %7 = arith.addf %5, %6 : vector<8x223xf32>
    %c0_6 = arith.constant 0 : index
    %c0_7 = arith.constant 0 : index
    %8 = vector.load %arg2[%c0_6, %c0_7] : memref<8x1xf32, #tpu.memory_space<vmem>>, vector<8x1xf32>
    %9 = vector.broadcast %8 : vector<8x1xf32> to vector<8x223xf32>
    %10 = arith.addf %7, %9 : vector<8x223xf32>
    %cst_8 = arith.constant 0.000000e+00 : f32
    %11 = vector.broadcast %cst_8 : f32 to vector<8x223xf32>
    %12 = arith.maximumf %10, %11 : vector<8x223xf32>
    %c0_9 = arith.constant 0 : index
    %c0_10 = arith.constant 0 : index
    %13 = vector.load %arg4[%c0_9, %c0_10] : memref<8x223xf32, #tpu.memory_space<vmem>>, vector<8x223xf32>
    tpu.vector_store %arg4[%c0_9, %c0_10], %12 {strides = array<i32>} : memref<8x223xf32, #tpu.memory_space<vmem>>, vector<8x223xf32>,
    return
  }
}

</mosaic_0001>

<llo_original>
// kernel: conv_transpose_relu.1
$region0: #{conv_transpose_relu.1}
  #allocation0 [shape = 'u32[]', space=smem, size = 0x4, offset = 0x4, fixed_abs, tag = 'smem constant byte address 0x4 - core index']
  #allocation1 [shape = 'u32[72,128]{1,0:T(1,128)}', space=vmem, size = 0x9000, scoped, tag = 'internal scratch']
  %s0 = inlined_call_operand.vmem [shape: f32[8,3], index: 0, kind: input, shape index: {}]
  %s1 = inlined_call_operand.vmem [shape: f32[8,3], index: 1, kind: input, shape index: {}]
  %s2 = inlined_call_operand.vmem [shape: f32[8,1], index: 2, kind: input, shape index: {}]
  %s3 = inlined_call_operand.vmem [shape: f32[3,224], index: 3, kind: input, shape index: {}]
  %s4 = inlined_call_operand.hbm [shape: f32[8,223], index: 4, kind: output, shape index: {}]
  %s5 = sld [smem:[#allocation0]]
  $region26: #{conv_transpose_relu.1} parent=0
    _
  %s7 = ssub.s32 1, %s5
  %s8 = scalar_select 0, %s7, %s5
  $region1: #{conv_transpose_relu.1} parent=0
    #allocation2 [shape = 'u8[8192]{0}', space=vmem, size = 0x2000, scoped, tag = 'output window, operand 0, single buffered']
    #allocation3 [shape = 's32[1]{0}', space=sflag, size = 0x4, scoped, tag = 'scoped memory for conv_transpose_relu.1']
    %9 = vsyncpa [#allocation3], 0
    // Predicated region
    $region2: #{conv_transpose_relu.1} parent=1 // pred_check
      _
    $region3: #{conv_transpose_relu.1} parent=1 // pred_check_branch
      %11 = sbr.rel (0) target = $region5
    $region4: #{conv_transpose_relu.1} parent=1 // pred_region
      _
    $region5: #{conv_transpose_relu.1} parent=1 // pred_fallthru
      _
    // Predicated region
    $region6: #{conv_transpose_relu.1} parent=1 // pred_check
      _
    $region7: #{conv_transpose_relu.1} parent=1 // pred_check_branch
      %13 = sbr.rel (0) target = $region9
    $region8: #{conv_transpose_relu.1} parent=1 // pred_region
      _
    $region9: #{conv_transpose_relu.1} parent=1 // pred_fallthru
      _
    // Predicated region
    $region10: #{conv_transpose_relu.1} parent=1 // pred_check
      _
    $region11: #{conv_transpose_relu.1} parent=1 // pred_check_branch
      %15 = sbr.rel (0) target = $region13
    $region12: #{conv_transpose_relu.1} parent=1 // pred_region
      _
    $region13: #{conv_transpose_relu.1} parent=1 // pred_fallthru
      _
    // Predicated region
    $region14: #{conv_transpose_relu.1} parent=1 // pred_check
      _
    $region15: #{conv_transpose_relu.1} parent=1 // pred_check_branch
      %17 = sbr.rel (0) target = $region17
    $region16: #{conv_transpose_relu.1} parent=1 // pred_region
      _
    $region17: #{conv_transpose_relu.1} parent=1 // pred_fallthru
      _
    %v18 = vld [vmem:[%s3] sm:$0x77]
    %v19 = vld [vmem:[%s0] sm:$0xff]
    %21 = vst [vmem:[#allocation1] ss:$2 sm:$0xff] %v18
    %v22 = vld.sshfl [vmem:[#allocation1] sm:$0xff pattern:$0x75316420]
    %v23 = vld.sshfl [vmem:[#allocation1 + $0x8] sm:$0xff pattern:$0x75316420]
    %vm24 = vcmask 23552
    %v26 = vsel %vm24, %v19, 0
    %vm28 = vcmask 1042432
    %v29 = vsel %vm28, %v22, 0
    %v31 = vsel %vm28, %v23, 0
    %33 = vmatpush.msra.mxu0 0.0
    %34 = vmatpush.msra.mxu0 0.0
    %35 = vmatpush.msra.mxu0 0.0
    %36 = vmatpush.msra.mxu0 0.0
    %37 = vmatpush.msra.mxu0 0.0
    %38 = vmatpush.msra.mxu0 0.0
    %39 = vmatpush.msra.mxu0 0.0
    %40 = vmatpush.msra.mxu0 0.0
    %41 = vmatpush.msra.mxu0 0.0
    %42 = vmatpush.msra.mxu0 0.0
    %43 = vmatpush.msra.mxu0 0.0
    %44 = vmatpush.msra.mxu0 0.0
    %45 = vmatpush.msra.mxu0 0.0
    %46 = vmatpush.msra.mxu0 0.0
    %47 = vmatpush.msra.mxu0 0.0
    %48 = vmatpush.msra.mxu0 %v29
    %49 = vmatmul.f32.gmra.mxu0 %v26
    %v50 = vpop.f32.mrf.mxu0
    %v51 = vadd.f32 0.0, %v50
    %52 = vdwg.mxu0
    %53 = vmatpush.msra.mxu0 0.0
    %54 = vmatpush.msra.mxu0 0.0
    %55 = vmatpush.msra.mxu0 0.0
    %56 = vmatpush.msra.mxu0 0.0
    %57 = vmatpush.msra.mxu0 0.0
    %58 = vmatpush.msra.mxu0 0.0
    %59 = vmatpush.msra.mxu0 0.0
    %60 = vmatpush.msra.mxu0 0.0
    %61 = vmatpush.msra.mxu0 0.0
    %62 = vmatpush.msra.mxu0 0.0
    %63 = vmatpush.msra.mxu0 0.0
    %64 = vmatpush.msra.mxu0 0.0
    %65 = vmatpush.msra.mxu0 0.0
    %66 = vmatpush.msra.mxu0 0.0
    %67 = vmatpush.msra.mxu0 0.0
    %68 = vmatpush.msra.mxu0 %v31
    %69 = vmatmul.f32.gmra.mxu0 %v26
    %v70 = vpop.f32.mrf.mxu0
    %v71 = vadd.f32 0.0, %v70
    %72 = vdwg.mxu0
    %v73 = vld [vmem:[%s1] sm:$0xff]
    %74 = vst [vmem:[#allocation1] ss:$2 sm:$0xff] %v18
    %v75 = vld.sshfl [vmem:[#allocation1] sm:$0xff pattern:$0x75316420]
    %v76 = vld.sshfl [vmem:[#allocation1 + $0x8] sm:$0xff pattern:$0x75316420]
    %v78 = vsel %vm24, %v73, 0
    %v80 = vsel %vm28, %v75, 0
    %v82 = vsel %vm28, %v76, 0
    %84 = vmatpush.msra.mxu0 0.0
    %85 = vmatpush.msra.mxu0 0.0
    %86 = vmatpush.msra.mxu0 0.0
    %87 = vmatpush.msra.mxu0 0.0
    %88 = vmatpush.msra.mxu0 0.0
    %89 = vmatpush.msra.mxu0 0.0
    %90 = vmatpush.msra.mxu0 0.0
    %91 = vmatpush.msra.mxu0 0.0
    %92 = vmatpush.msra.mxu0 0.0
    %93 = vmatpush.msra.mxu0 0.0
    %94 = vmatpush.msra.mxu0 0.0
    %95 = vmatpush.msra.mxu0 0.0
    %96 = vmatpush.msra.mxu0 0.0
    %97 = vmatpush.msra.mxu0 0.0
    %98 = vmatpush.msra.mxu0 0.0
    %99 = vmatpush.msra.mxu0 %v80
    %100 = vmatmul.f32.gmra.mxu0 %v78
    %v101 = vpop.f32.mrf.mxu0
    %v102 = vadd.f32 0.0, %v101
    %103 = vdwg.mxu0
    %104 = vmatpush.msra.mxu0 0.0
    %105 = vmatpush.msra.mxu0 0.0
    %106 = vmatpush.msra.mxu0 0.0
    %107 = vmatpush.msra.mxu0 0.0
    %108 = vmatpush.msra.mxu0 0.0
    %109 = vmatpush.msra.mxu0 0.0
    %110 = vmatpush.msra.mxu0 0.0
    %111 = vmatpush.msra.mxu0 0.0
    %112 = vmatpush.msra.mxu0 0.0
    %113 = vmatpush.msra.mxu0 0.0
    %114 = vmatpush.msra.mxu0 0.0
    %115 = vmatpush.msra.mxu0 0.0
    %116 = vmatpush.msra.mxu0 0.0
    %117 = vmatpush.msra.mxu0 0.0
    %118 = vmatpush.msra.mxu0 0.0
    %119 = vmatpush.msra.mxu0 %v82
    %120 = vmatmul.f32.gmra.mxu0 %v78
    %v121 = vpop.f32.mrf.mxu0
    %v122 = vadd.f32 0.0, %v121
    %123 = vdwg.mxu0
    %126 = vrot.lane.b32.xlu0 %v102, 127
    %v127 = vpop.permute.xlu0 %126
    %128 = vrot.lane.b32.xlu0 %v122, 127
    %v129 = vpop.permute.xlu0 %128
    %vm130 = vcmask 1039360
    %v131 = vsel %vm130, %v127, %v129
    %v134 = vadd.f32 %v51, %v131
    %v135 = vadd.f32 %v71, %v129
    %v136 = vld [vmem:[%s2] sm:$0xff]
    %138 = vset.pattern.permute.xlu0 0
    %139 = vperm.xlu0 %138, %v136
    %v140 = vpop.permute.xlu0 %139
    %v142 = vadd.f32 %v134, %v140
    %v143 = vadd.f32 %v135, %v140
    %v144 = vmax.f32 %v142, 0.0
    %v145 = vmax.f32 %v143, 0.0
    %146 = vst [vmem:[#allocation2] sm:$0xff] %v144
    %vm147 = vcmask 777216
    %148 = vst.msk [vmem:[#allocation2 + $0x8] sm:$0xff] %vm147, %v145
    // Predicated region
    $region18: #{conv_transpose_relu.1} parent=1 // pred_check
      _
    $region19: #{conv_transpose_relu.1} parent=1 // pred_check_branch
      %150 = sbr.rel (0) target = $region21
    $region20: #{conv_transpose_relu.1} parent=1 // pred_region
      %152 = vsyncadd [#allocation3], 0
      %s154 = sshll.u32 [#allocation2], 4
      %s155 = int_to_ptr.vmem [resolvable:$true] %s154
      %s156 = sshll.u32 %s4, 4
      %s157 = int_to_ptr.hbm [resolvable:$true] %s156
      %159 = dma.vmem_to_hbm [thread:$0]  %s155, 256, %s157, [#allocation3]
    $region21: #{conv_transpose_relu.1} parent=1 // pred_fallthru
      _
    // Predicated region
    $region22: #{conv_transpose_relu.1} parent=1 // pred_check
      _
    $region23: #{conv_transpose_relu.1} parent=1 // pred_check_branch
      %161 = sbr.rel (0) target = $region25
    $region24: #{conv_transpose_relu.1} parent=1 // pred_region
      %163 = dma.done [#allocation3], 256
    $region25: #{conv_transpose_relu.1} parent=1 // pred_fallthru
      _
    %164 = vsyncpa [#allocation3], 1

</llo_original>
